<compile_context>
chip_gen: v5e
topology: v5e:2x2
jax: 0.10.0
libtpu: 0.0.40
codegen_flags: <defaults>
</compile_context>

<pallas_src>
import functools

import jax
import jax.numpy as jnp
from jax.experimental import pallas as pl
from jax.experimental.pallas import tpu as pltpu


def _round_up(x, m):
    return ((x + m - 1) // m) * m


def _choose_batch_tile(B, batch_tile):
    """Batch tile: multiple of 8, capped by batch_tile; keep >= 2 grid steps
    when possible so dimension_semantics=('parallel',) spans both v7x cores."""
    TB = _round_up(min(batch_tile, B), 8)
    if pl.cdiv(B, TB) < 2 and B >= 16:
        TB = _round_up(pl.cdiv(B, 2), 8)
    return max(TB, 8)


def _value_net_kernel(state_ref, action_ref, w1s_ref, w1a_ref, b1_ref,
                      w2_ref, b2_ref, w3_ref, b3_ref, o_ref):
    # Activations are streamed as bf16; upcast once (VPU) and accumulate in f32.
    s = state_ref[...].astype(jnp.float32)
    a = action_ref[...].astype(jnp.float32)

    # Layer 1: fused concat -> split matmul (MXU), bias + ReLU on the VPU.
    h1 = (jnp.dot(s, w1s_ref[...], preferred_element_type=jnp.float32)
          + jnp.dot(a, w1a_ref[...], preferred_element_type=jnp.float32)
          + b1_ref[...])
    h1 = jnp.maximum(h1, 0.0)

    # Layer 2: Linear + ReLU.
    h2 = jnp.dot(h1, w2_ref[...], preferred_element_type=jnp.float32) + b2_ref[...]
    h2 = jnp.maximum(h2, 0.0)

    # Layer 3 (out_features == 1): lane-dense (1, TB) result via an M=1 MXU
    # dot_general (w3 (1,H) contracted with h2 (TB,H) over H) + SMEM scalar bias.
    # Stored as an unmasked lane-dense row instead of a (TB, 1) masked column.
    out_row = jax.lax.dot_general(
        w3_ref[...], h2,
        dimension_numbers=(((1,), (1,)), ((), ())),
        preferred_element_type=jnp.float32)                     # (1, TB)
    o_ref[...] = (out_row + b3_ref[0])[None].astype(o_ref.dtype)  # (1, 1, TB)


@functools.partial(jax.jit, static_argnames=("batch_tile",))
def value_network_forward(state, action, params, *, batch_tile=4096):
    """state: (B, obs_dim), action: (B, action_dim). Returns (B, 1) float32."""
    w1s, w1a, b1, w2, b2, w3_row, b3 = params
    B, obs_dim = state.shape
    act_dim = action.shape[1]

    # bf16-stream the per-row activations (weights stay resident f32).
    state = state.astype(jnp.bfloat16)
    action = action.astype(jnp.bfloat16)

    TB = _choose_batch_tile(B, batch_tile)
    num_tiles = pl.cdiv(B, TB)

    # Only sublane-align the batch (<=7 rows, and only when B % 8 != 0). No pad
    # to a multiple of TB: the ragged last tile reads undefined rows past the
    # array, but those rows only produce output lanes sliced off below.
    Bp = _round_up(B, 8)
    if Bp != B:
        state = jnp.pad(state, ((0, Bp - B), (0, 0)))
        action = jnp.pad(action, ((0, Bp - B), (0, 0)))

    batch_spec = lambda d: pl.BlockSpec((TB, d), lambda i: (i, 0))
    resident = lambda a: pl.BlockSpec(a.shape, lambda i: (0,) * a.ndim)

    out = pl.pallas_call(
        _value_net_kernel,
        out_shape=jax.ShapeDtypeStruct((num_tiles, 1, TB), jnp.float32),
        grid=(num_tiles,),
        in_specs=[
            batch_spec(obs_dim),                                # state  (TB, obs)
            batch_spec(act_dim),                                # action (TB, act)
            resident(w1s),                                      # (obs_dim, H)
            resident(w1a),                                      # (act_dim, H)
            resident(b1),                                       # (1, H)
            resident(w2),                                       # (H, H)
            resident(b2),                                       # (1, H)
            resident(w3_row),                                   # (1, H)
            pl.BlockSpec(memory_space=pltpu.MemorySpace.SMEM),  # b3 scalar (1,)
        ],
        out_specs=pl.BlockSpec((1, 1, TB), lambda i: (i, 0, 0)),
        compiler_params=pltpu.CompilerParams(
            dimension_semantics=("parallel",),
            vmem_limit_bytes=64 * 1024 * 1024),
    )(state, action, w1s, w1a, b1, w2, b2, w3_row, b3)

    # Lane-dense slab -> (B, 1); rows >= B (ragged-tile garbage) are discarded.
    return out.reshape(num_tiles * TB)[:B].reshape(B, 1)


def init_params(key, obs_dim, action_dim, hidden_dim, init_w=0.003):
    """Init mirroring the PyTorch module.

    linear1/linear2 use uniform(-1/sqrt(fan_in), 1/sqrt(fan_in)); linear3 uses
    uniform(-init_w, init_w). Weights are stored (in, out); W1 is split into its
    state/action row blocks so the kernel fuses the concat; W3 is a (1, H) row
    and b3 a (1,) SMEM scalar."""
    in1 = obs_dim + action_dim
    k = jax.random.split(key, 6)

    def lin(kw, kb, fan_in, fan_out, bound):
        w = jax.random.uniform(kw, (fan_in, fan_out), jnp.float32, -bound, bound)
        b = jax.random.uniform(kb, (1, fan_out), jnp.float32, -bound, bound)
        return w, b

    w1, b1 = lin(k[0], k[1], in1, hidden_dim, 1.0 / float(jnp.sqrt(in1)))
    w2, b2 = lin(k[2], k[3], hidden_dim, hidden_dim, 1.0 / float(jnp.sqrt(hidden_dim)))
    w3, b3 = lin(k[4], k[5], hidden_dim, 1, init_w)

    w1s, w1a = w1[:obs_dim], w1[obs_dim:]
    w3_row = w3.T
    b3_scalar = b3.reshape((1,))
    return (w1s, w1a, b1, w2, b2, w3_row, b3_scalar)


def _reference_forward(state, action, params):
    """Pure-JAX reference on the same bf16-quantized inputs, f32 math."""
    w1s, w1a, b1, w2, b2, w3_row, b3 = params
    s = state.astype(jnp.bfloat16).astype(jnp.float32)
    a = action.astype(jnp.bfloat16).astype(jnp.float32)
    x = jnp.concatenate([s, a], axis=1)
    w1 = jnp.concatenate([w1s, w1a], axis=0)
    x = jax.nn.relu(x @ w1 + b1)
    x = jax.nn.relu(x @ w2 + b2)
    return x @ w3_row.T + b3[0]


if __name__ == "__main__":
    obs_dim, action_dim, hidden_dim = 17, 6, 32

    key = jax.random.PRNGKey(0)
    k_params, k_state, k_action = jax.random.split(key, 3)
    params = init_params(k_params, obs_dim, action_dim, hidden_dim)

    # Small case (B=2, single 8-row tile).
    batch = 2
    state = jax.random.normal(k_state, (batch, obs_dim), jnp.float32)
    action = jax.random.normal(k_action, (batch, action_dim), jnp.float32)
    out = jax.block_until_ready(value_network_forward(state, action, params))
    ref = _reference_forward(state, action, params)
    assert out.shape == (batch, 1), out.shape
    assert jnp.allclose(out, ref, atol=1e-4, rtol=1e-3), (out, ref)

    # Multi-tile case: grid >= 2 (megacore path) with a ragged last tile
    # (40 rows = 16 + 16 + 8) exercising the no-pad boundary handling.
    batch2 = 40
    k_s2, k_a2 = jax.random.split(jax.random.PRNGKey(1))
    state2 = jax.random.normal(k_s2, (batch2, obs_dim), jnp.float32)
    action2 = jax.random.normal(k_a2, (batch2, action_dim), jnp.float32)
    out2 = jax.block_until_ready(
        value_network_forward(state2, action2, params, batch_tile=16))
    ref2 = _reference_forward(state2, action2, params)
    assert out2.shape == (batch2, 1), out2.shape
    assert jnp.allclose(out2, ref2, atol=1e-4, rtol=1e-3), (out2, ref2)

    print("KERNEL_OK")
</pallas_src>

<mosaic_0001>
module attributes {stable_mosaic.version = 11 : i64} {
  func.func @_value_net_kernel(%arg0: i32, %arg1: memref<8x17xbf16, #tpu.memory_space<vmem>>, %arg2: memref<8x6xbf16, #tpu.memory_space<vmem>>, %arg3: memref<17x32xf32, #tpu.memory_space<vmem>>, %arg4: memref<6x32xf32, #tpu.memory_space<vmem>>, %arg5: memref<1x32xf32, #tpu.memory_space<vmem>>, %arg6: memref<32x32xf32, #tpu.memory_space<vmem>>, %arg7: memref<1x32xf32, #tpu.memory_space<vmem>>, %arg8: memref<1x32xf32, #tpu.memory_space<vmem>>, %arg9: memref<1xf32, #tpu.memory_space<smem>>, %arg10: memref<1x1x8xf32, #tpu.memory_space<vmem>>) attributes {dimension_semantics = [#tpu.dimension_semantics<parallel>], iteration_bounds = array<i64: 1>, scalar_prefetch = 0 : i64, scratch_operands = 0 : i64, tpu.core_type = #tpu.core_type<tc>, window_params = [{transform_indices = @transform_0, window_bounds = array<i64: 8, 17>}, {transform_indices = @transform_1, window_bounds = array<i64: 8, 6>}, {pipeline_mode = #tpu.pipeline_mode<synchronous>, transform_indices = @transform_2, window_bounds = array<i64: 17, 32>}, {pipeline_mode = #tpu.pipeline_mode<synchronous>, transform_indices = @transform_3, window_bounds = array<i64: 6, 32>}, {pipeline_mode = #tpu.pipeline_mode<synchronous>, transform_indices = @transform_4, window_bounds = array<i64: 1, 32>}, {pipeline_mode = #tpu.pipeline_mode<synchronous>, transform_indices = @transform_5, window_bounds = array<i64: 32, 32>}, {pipeline_mode = #tpu.pipeline_mode<synchronous>, transform_indices = @transform_6, window_bounds = array<i64: 1, 32>}, {pipeline_mode = #tpu.pipeline_mode<synchronous>, transform_indices = @transform_7, window_bounds = array<i64: 1, 32>}, {transform_indices = @transform_8, window_bounds = array<i64: 1>}, {transform_indices = @transform_9, window_bounds = array<i64: 1, 1, 8>}]} {
    %c0 = arith.constant 0 : index
    %c0_0 = arith.constant 0 : index
    %0 = vector.load %arg1[%c0, %c0_0] : memref<8x17xbf16, #tpu.memory_space<vmem>>, vector<8x17xbf16>
    %1 = arith.extf %0 : vector<8x17xbf16> to vector<8x17xf32>
    %c0_1 = arith.constant 0 : index
    %c0_2 = arith.constant 0 : index
    %2 = vector.load %arg2[%c0_1, %c0_2] : memref<8x6xbf16, #tpu.memory_space<vmem>>, vector<8x6xbf16>
    %3 = arith.extf %2 : vector<8x6xbf16> to vector<8x6xf32>
    %c0_3 = arith.constant 0 : index
    %c0_4 = arith.constant 0 : index
    %4 = vector.load %arg3[%c0_3, %c0_4] : memref<17x32xf32, #tpu.memory_space<vmem>>, vector<17x32xf32>
    %cst = arith.constant dense<0.000000e+00> : vector<8x32xf32>
    %5 = tpu.matmul %1, %4, %cst {dimension_numbers = #tpu.dot_dimension_numbers<[1], [0], [0], [1], [0, 0, 1, 1], [], []>} : vector<8x17xf32>, vector<17x32xf32>, vector<8x32xf32> -> vector<8x32xf32>
    %c0_5 = arith.constant 0 : index
    %c0_6 = arith.constant 0 : index
    %6 = vector.load %arg4[%c0_5, %c0_6] : memref<6x32xf32, #tpu.memory_space<vmem>>, vector<6x32xf32>
    %cst_7 = arith.constant dense<0.000000e+00> : vector<8x32xf32>
    %7 = tpu.matmul %3, %6, %cst_7 {dimension_numbers = #tpu.dot_dimension_numbers<[1], [0], [0], [1], [0, 0, 1, 1], [], []>} : vector<8x6xf32>, vector<6x32xf32>, vector<8x32xf32> -> vector<8x32xf32>
    %8 = arith.addf %5, %7 : vector<8x32xf32>
    %c0_8 = arith.constant 0 : index
    %c0_9 = arith.constant 0 : index
    %9 = vector.load %arg5[%c0_8, %c0_9] : memref<1x32xf32, #tpu.memory_space<vmem>>, vector<1x32xf32>
    %10 = vector.broadcast %9 : vector<1x32xf32> to vector<8x32xf32>
    %11 = arith.addf %8, %10 : vector<8x32xf32>
    %cst_10 = arith.constant 0.000000e+00 : f32
    %12 = vector.broadcast %cst_10 : f32 to vector<8x32xf32>
    %13 = arith.maximumf %11, %12 : vector<8x32xf32>
    %c0_11 = arith.constant 0 : index
    %c0_12 = arith.constant 0 : index
    %14 = vector.load %arg6[%c0_11, %c0_12] : memref<32x32xf32, #tpu.memory_space<vmem>>, vector<32x32xf32>
    %cst_13 = arith.constant dense<0.000000e+00> : vector<8x32xf32>
    %15 = tpu.matmul %13, %14, %cst_13 {dimension_numbers = #tpu.dot_dimension_numbers<[1], [0], [0], [1], [0, 0, 1, 1], [], []>} : vector<8x32xf32>, vector<32x32xf32>, vector<8x32xf32> -> vector<8x32xf32>
    %c0_14 = arith.constant 0 : index
    %c0_15 = arith.constant 0 : index
    %16 = vector.load %arg7[%c0_14, %c0_15] : memref<1x32xf32, #tpu.memory_space<vmem>>, vector<1x32xf32>
    %17 = vector.broadcast %16 : vector<1x32xf32> to vector<8x32xf32>
    %18 = arith.addf %15, %17 : vector<8x32xf32>
    %cst_16 = arith.constant 0.000000e+00 : f32
    %19 = vector.broadcast %cst_16 : f32 to vector<8x32xf32>
    %20 = arith.maximumf %18, %19 : vector<8x32xf32>
    %c0_17 = arith.constant 0 : index
    %c0_18 = arith.constant 0 : index
    %21 = vector.load %arg8[%c0_17, %c0_18] : memref<1x32xf32, #tpu.memory_space<vmem>>, vector<1x32xf32>
    %cst_19 = arith.constant dense<0.000000e+00> : vector<1x8xf32>
    %22 = tpu.matmul %21, %20, %cst_19 {dimension_numbers = #tpu.dot_dimension_numbers<[1], [1], [0], [0], [0, 0, 1, 0], [], []>} : vector<1x32xf32>, vector<8x32xf32>, vector<1x8xf32> -> vector<1x8xf32>
    %c0_20 = arith.constant 0 : index
    %23 = memref.load %arg9[%c0_20] : memref<1xf32, #tpu.memory_space<smem>>
    %24 = vector.broadcast %23 : f32 to vector<1x8xf32>
    %25 = arith.addf %22, %24 : vector<1x8xf32>
    %26 = vector.shape_cast %25 : vector<1x8xf32> to vector<1x1x8xf32>
    %c0_21 = arith.constant 0 : index
    %c0_22 = arith.constant 0 : index
    %c0_23 = arith.constant 0 : index
    %27 = vector.load %arg10[%c0_21, %c0_22, %c0_23] : memref<1x1x8xf32, #tpu.memory_space<vmem>>, vector<1x1x8xf32>
    tpu.vector_store %arg10[%c0_21, %c0_22, %c0_23], %26 {strides = array<i32>} : memref<1x1x8xf32, #tpu.memory_space<vmem>>, vector<1x1x8xf32>,
    return
  }
  func.func @transform_0(%arg0: i32) -> (i32, i32) {
    %c0_i32 = arith.constant 0 : i32
    %c0_i32_0 = arith.constant 0 : i32
    return %arg0, %c0_i32 : i32, i32
  }
  func.func @transform_1(%arg0: i32) -> (i32, i32) {
    %c0_i32 = arith.constant 0 : i32
    %c0_i32_0 = arith.constant 0 : i32
    return %arg0, %c0_i32 : i32, i32
  }
  func.func @transform_2(%arg0: i32) -> (i32, i32) {
    %c0_i32 = arith.constant 0 : i32
    %c0_i32_0 = arith.constant 0 : i32
    %c0_i32_1 = arith.constant 0 : i32
    return %c0_i32, %c0_i32_0 : i32, i32
  }
  func.func @transform_3(%arg0: i32) -> (i32, i32) {
    %c0_i32 = arith.constant 0 : i32
    %c0_i32_0 = arith.constant 0 : i32
    %c0_i32_1 = arith.constant 0 : i32
    return %c0_i32, %c0_i32_0 : i32, i32
  }
  func.func @transform_4(%arg0: i32) -> (i32, i32) {
    %c0_i32 = arith.constant 0 : i32
    %c0_i32_0 = arith.constant 0 : i32
    %c0_i32_1 = arith.constant 0 : i32
    return %c0_i32, %c0_i32_0 : i32, i32
  }
  func.func @transform_5(%arg0: i32) -> (i32, i32) {
    %c0_i32 = arith.constant 0 : i32
    %c0_i32_0 = arith.constant 0 : i32
    %c0_i32_1 = arith.constant 0 : i32
    return %c0_i32, %c0_i32_0 : i32, i32
  }
  func.func @transform_6(%arg0: i32) -> (i32, i32) {
    %c0_i32 = arith.constant 0 : i32
    %c0_i32_0 = arith.constant 0 : i32
    %c0_i32_1 = arith.constant 0 : i32
    return %c0_i32, %c0_i32_0 : i32, i32
  }
  func.func @transform_7(%arg0: i32) -> (i32, i32) {
    %c0_i32 = arith.constant 0 : i32
    %c0_i32_0 = arith.constant 0 : i32
    %c0_i32_1 = arith.constant 0 : i32
    return %c0_i32, %c0_i32_0 : i32, i32
  }
  func.func @transform_8(%arg0: i32) -> i32 {
    %c0_i32 = arith.constant 0 : i32
    %c0_i32_0 = arith.constant 0 : i32
    return %c0_i32 : i32
  }
  func.func @transform_9(%arg0: i32) -> (i32, i32, i32) {
    %c0_i32 = arith.constant 0 : i32
    %c0_i32_0 = arith.constant 0 : i32
    %c0_i32_1 = arith.constant 0 : i32
    return %arg0, %c0_i32, %c0_i32_0 : i32, i32, i32
  }
}

</mosaic_0001>

<llo_original>
// kernel: value_network_forward.1
$region0: #{value_network_forward.1}
  #allocation0 [shape = 'u32[]', space=smem, size = 0x4, offset = 0x4, fixed_abs, tag = 'smem constant byte address 0x4 - core index']
  #allocation1 [shape = 'u32[72,128]{1,0:T(1,128)}', space=vmem, size = 0x9000, scoped, tag = 'internal scratch']
  #allocation2 [shape = 'f32[1]{0:T(128)S(6)}', space=smem, size = 0x200, scoped, tag = 'scoped memory for value_network_forward.1']
  %s0 = inlined_call_operand.vmem [shape: bf16[8,17], index: 0, kind: input, shape index: {}]
  %s1 = inlined_call_operand.vmem [shape: bf16[8,6], index: 1, kind: input, shape index: {}]
  %s2 = inlined_call_operand.hbm [shape: f32[17,32], index: 2, kind: input, shape index: {}]
  %s3 = inlined_call_operand.vmem [shape: f32[6,32], index: 3, kind: input, shape index: {}]
  %s4 = inlined_call_operand.vmem [shape: f32[1,32], index: 4, kind: input, shape index: {}]
  %s5 = inlined_call_operand.hbm [shape: f32[32,32], index: 5, kind: input, shape index: {}]
  %s6 = inlined_call_operand.vmem [shape: f32[1,32], index: 6, kind: input, shape index: {}]
  %s7 = inlined_call_operand.vmem [shape: f32[1,32], index: 7, kind: input, shape index: {}]
  %s8 = inlined_call_operand.<no memory space> [shape: f32[1], index: 8, kind: input, shape index: {}]
  %s9 = inlined_call_operand.vmem [shape: f32[1,1,8], index: 9, kind: output, shape index: {}]
  %s10 = sld [smem:[#allocation0]]
  $region54: #{value_network_forward.1} parent=0
    _
  %s12 = ssub.s32 1, %s10
  %s13 = scalar_select 0, %s12, %s10
  %14 = sst [smem:[#allocation2]] %s8
  $region1: #{value_network_forward.1} parent=0
    #allocation3 [shape = 'u8[12288]{0}', space=vmem, size = 0x3000, scoped, tag = 'input window, operand 2, single buffered']
    #allocation4 [shape = 's32[1]{0}', space=sflag, size = 0x4, scoped, tag = 'scoped memory for value_network_forward.1']
    #allocation5 [shape = 'u8[16384]{0}', space=vmem, size = 0x4000, scoped, tag = 'input window, operand 5, single buffered']
    #allocation6 [shape = 's32[1]{0}', space=sflag, size = 0x4, scoped, tag = 'scoped memory for value_network_forward.1']
    %15 = vsyncpa [#allocation4], 0
    %16 = vsyncpa [#allocation6], 0
    // Predicated region
    $region2: #{value_network_forward.1} parent=1 // pred_check
      _
    $region3: #{value_network_forward.1} parent=1 // pred_check_branch
      %18 = sbr.rel (0) target = $region5
    $region4: #{value_network_forward.1} parent=1 // pred_region
      _
    $region5: #{value_network_forward.1} parent=1 // pred_fallthru
      _
    // Predicated region
    $region6: #{value_network_forward.1} parent=1 // pred_check
      _
    $region7: #{value_network_forward.1} parent=1 // pred_check_branch
      %20 = sbr.rel (0) target = $region9
    $region8: #{value_network_forward.1} parent=1 // pred_region
      _
    $region9: #{value_network_forward.1} parent=1 // pred_fallthru
      _
    // Predicated region
    $region10: #{value_network_forward.1} parent=1 // pred_check
      _
    $region11: #{value_network_forward.1} parent=1 // pred_check_branch
      %22 = sbr.rel (0) target = $region13
    $region12: #{value_network_forward.1} parent=1 // pred_region
      %24 = vsyncadd [#allocation4], 0
      %s25 = sshll.u32 %s2, 4
      %s26 = int_to_ptr.hbm [resolvable:$true] %s25
      %s27 = sshll.u32 [#allocation3], 4
      %s28 = int_to_ptr.vmem [resolvable:$true] %s27
      %33 = dma.hbm_to_vmem [thread:$0]  %s26, 384, %s28, [#allocation4], 128, 128, 8
    $region13: #{value_network_forward.1} parent=1 // pred_fallthru
      _
    // Predicated region
    $region14: #{value_network_forward.1} parent=1 // pred_check
      _
    $region15: #{value_network_forward.1} parent=1 // pred_check_branch
      %35 = sbr.rel (0) target = $region17
    $region16: #{value_network_forward.1} parent=1 // pred_region
      _
    $region17: #{value_network_forward.1} parent=1 // pred_fallthru
      _
    // Predicated region
    $region18: #{value_network_forward.1} parent=1 // pred_check
      _
    $region19: #{value_network_forward.1} parent=1 // pred_check_branch
      %37 = sbr.rel (0) target = $region21
    $region20: #{value_network_forward.1} parent=1 // pred_region
      _
    $region21: #{value_network_forward.1} parent=1 // pred_fallthru
      _
    // Predicated region
    $region22: #{value_network_forward.1} parent=1 // pred_check
      _
    $region23: #{value_network_forward.1} parent=1 // pred_check_branch
      %39 = sbr.rel (0) target = $region25
    $region24: #{value_network_forward.1} parent=1 // pred_region
      %41 = vsyncadd [#allocation6], 0
      %s42 = sshll.u32 %s5, 4
      %s43 = int_to_ptr.hbm [resolvable:$true] %s42
      %s44 = sshll.u32 [#allocation5], 4
      %s45 = int_to_ptr.vmem [resolvable:$true] %s44
      %50 = dma.hbm_to_vmem [thread:$0]  %s43, 512, %s45, [#allocation6], 128, 128, 8
    $region25: #{value_network_forward.1} parent=1 // pred_fallthru
      _
    // Predicated region
    $region26: #{value_network_forward.1} parent=1 // pred_check
      _
    $region27: #{value_network_forward.1} parent=1 // pred_check_branch
      %52 = sbr.rel (0) target = $region29
    $region28: #{value_network_forward.1} parent=1 // pred_region
      _
    $region29: #{value_network_forward.1} parent=1 // pred_fallthru
      _
    // Predicated region
    $region30: #{value_network_forward.1} parent=1 // pred_check
      _
    $region31: #{value_network_forward.1} parent=1 // pred_check_branch
      %54 = sbr.rel (0) target = $region33
    $region32: #{value_network_forward.1} parent=1 // pred_region
      _
    $region33: #{value_network_forward.1} parent=1 // pred_fallthru
      _
    // Predicated region
    $region34: #{value_network_forward.1} parent=1 // pred_check
      _
    $region35: #{value_network_forward.1} parent=1 // pred_check_branch
      %56 = sbr.rel (0) target = $region37
    $region36: #{value_network_forward.1} parent=1 // pred_region
      _
    $region37: #{value_network_forward.1} parent=1 // pred_fallthru
      _
    // Predicated region
    $region38: #{value_network_forward.1} parent=1 // pred_check
      _
    $region39: #{value_network_forward.1} parent=1 // pred_check_branch
      %58 = sbr.rel (0) target = $region41
    $region40: #{value_network_forward.1} parent=1 // pred_region
      %60 = dma.done [#allocation4], 384
    $region41: #{value_network_forward.1} parent=1 // pred_fallthru
      _
    // Predicated region
    $region42: #{value_network_forward.1} parent=1 // pred_check
      _
    $region43: #{value_network_forward.1} parent=1 // pred_check_branch
      %62 = sbr.rel (0) target = $region45
    $region44: #{value_network_forward.1} parent=1 // pred_region
      %64 = dma.done [#allocation6], 512
    $region45: #{value_network_forward.1} parent=1 // pred_fallthru
      _
    %v65 = vld [vmem:[%s0] sm:$0xf]
    %v66 = vunpack.c.l.bf16 %v65
    %v67 = vld [vmem:[%s1] sm:$0xf]
    %v68 = vunpack.c.l.bf16 %v67
    %v69 = vld [vmem:[#allocation3] sm:$0xff]
    %v70 = vld [vmem:[#allocation3 + $0x8] sm:$0xff]
    %v71 = vld [vmem:[#allocation3 + $0x10] sm:$0x1]
    %v72 = vld [vmem:[%s3] sm:$0x3f]
    %vm73 = vcmask 48128
    %v75 = vsel %vm73, %v68, 0
    %vm77 = vcmask 1045504
    %v79 = vsel %vm77, %v72, 0
    %81 = vmatpush.msra.mxu0 0.0
    %82 = vmatpush.msra.mxu0 0.0
    %83 = vmatpush.msra.mxu0 0.0
    %84 = vmatpush.msra.mxu0 0.0
    %85 = vmatpush.msra.mxu0 0.0
    %86 = vmatpush.msra.mxu0 0.0
    %87 = vmatpush.msra.mxu0 0.0
    %88 = vmatpush.msra.mxu0 0.0
    %89 = vmatpush.msra.mxu0 0.0
    %90 = vmatpush.msra.mxu0 0.0
    %91 = vmatpush.msra.mxu0 0.0
    %92 = vmatpush.msra.mxu0 0.0
    %93 = vmatpush.msra.mxu0 0.0
    %94 = vmatpush.msra.mxu0 0.0
    %95 = vmatpush.msra.mxu0 0.0
    %96 = vmatpush.msra.mxu0 %v79
    %97 = vmatmul.f32.gmra.mxu0 %v75
    %v98 = vpop.f32.mrf.mxu0
    %v99 = vadd.f32 0.0, %v98
    %100 = vdwg.mxu0
    %vm101 = vcmask 138240
    %v103 = vsel %vm101, %v66, 0
    %vm105 = vcmask 1040384
    %v107 = vsel %vm105, %v71, 0
    %109 = vmatpush.msra.mxu0 0.0
    %110 = vmatpush.msra.mxu0 0.0
    %111 = vmatpush.msra.mxu0 0.0
    %112 = vmatpush.msra.mxu0 0.0
    %113 = vmatpush.msra.mxu0 0.0
    %114 = vmatpush.msra.mxu0 0.0
    %115 = vmatpush.msra.mxu0 0.0
    %116 = vmatpush.msra.mxu0 0.0
    %117 = vmatpush.msra.mxu0 0.0
    %118 = vmatpush.msra.mxu0 0.0
    %119 = vmatpush.msra.mxu0 0.0
    %120 = vmatpush.msra.mxu0 0.0
    %121 = vmatpush.msra.mxu0 0.0
    %122 = vmatpush.msra.mxu0 %v107
    %123 = vmatpush.msra.mxu0 %v70
    %124 = vmatpush.msra.mxu0 %v69
    %125 = vmatmul.f32.gmra.mxu0 %v103
    %v126 = vpop.f32.mrf.mxu0
    %v127 = vadd.f32 %v99, %v126
    %128 = vdwg.mxu0
    %v129 = vld [vmem:[%s4] sm:$0x1]
    %v131 = vperm.slane %v129, 0
    %v133 = vadd.f32 %v127, %v131
    %v134 = vmax.f32 %v133, 0.0
    %v135 = vld [vmem:[#allocation5] sm:$0xff]
    %v136 = vld [vmem:[#allocation5 + $0x8] sm:$0xff]
    %v137 = vld [vmem:[#allocation5 + $0x10] sm:$0xff]
    %v138 = vld [vmem:[#allocation5 + $0x18] sm:$0xff]
    %v139 = vld [vmem:[%s6] sm:$0x1]
    %v141 = vperm.slane %v139, 0
    %vm143 = vcmask 261120
    %v145 = vsel %vm143, %v134, 0
    %147 = vmatpush.msra.mxu0 0.0
    %148 = vmatpush.msra.mxu0 0.0
    %149 = vmatpush.msra.mxu0 0.0
    %150 = vmatpush.msra.mxu0 0.0
    %151 = vmatpush.msra.mxu0 0.0
    %152 = vmatpush.msra.mxu0 0.0
    %153 = vmatpush.msra.mxu0 0.0
    %154 = vmatpush.msra.mxu0 0.0
    %155 = vmatpush.msra.mxu0 0.0
    %156 = vmatpush.msra.mxu0 0.0
    %157 = vmatpush.msra.mxu0 0.0
    %158 = vmatpush.msra.mxu0 0.0
    %159 = vmatpush.msra.mxu0 %v138
    %160 = vmatpush.msra.mxu0 %v137
    %161 = vmatpush.msra.mxu0 %v136
    %162 = vmatpush.msra.mxu0 %v135
    %163 = vmatmul.f32.gmra.mxu0 %v145
    %v164 = vpop.f32.mrf.mxu0
    %v165 = vadd.f32 %v141, %v164
    %166 = vdwg.mxu0
    %v167 = vmax.f32 %v165, 0.0
    %v168 = vld [vmem:[%s7] sm:$0x1]
    %s169 = sld [smem:[#allocation2]]
    %v170 = vstv %s169
    %v172 = vsel %vm143, %v168, 0
    %v175 = vsel %vm143, %v167, 0
    %177 = vmatpush.xpose.msra.mxu0 0.0
    %178 = vmatpush.xpose.msra.mxu0 0.0
    %179 = vmatpush.xpose.msra.mxu0 0.0
    %180 = vmatpush.xpose.msra.mxu0 0.0
    %181 = vmatpush.xpose.msra.mxu0 0.0
    %182 = vmatpush.xpose.msra.mxu0 0.0
    %183 = vmatpush.xpose.msra.mxu0 0.0
    %184 = vmatpush.xpose.msra.mxu0 0.0
    %185 = vmatpush.xpose.msra.mxu0 0.0
    %186 = vmatpush.xpose.msra.mxu0 0.0
    %187 = vmatpush.xpose.msra.mxu0 0.0
    %188 = vmatpush.xpose.msra.mxu0 0.0
    %189 = vmatpush.xpose.msra.mxu0 0.0
    %190 = vmatpush.xpose.msra.mxu0 0.0
    %191 = vmatpush.xpose.msra.mxu0 0.0
    %192 = vmatpush.xpose.msra.mxu0 %v175
    %193 = vmatmul.f32.gmra.mxu0 %v172
    %v194 = vpop.f32.mrf.mxu0
    %v195 = vadd.f32 %v170, %v194
    %196 = vdwg.mxu0
    %vm197 = vcmask 57344
    %198 = vst.msk [vmem:[%s9] sm:$0x1] %vm197, %v195
    // Predicated region
    $region46: #{value_network_forward.1} parent=1 // pred_check
      _
    $region47: #{value_network_forward.1} parent=1 // pred_check_branch
      %200 = sbr.rel (0) target = $region49
    $region48: #{value_network_forward.1} parent=1 // pred_region
      _
    $region49: #{value_network_forward.1} parent=1 // pred_fallthru
      _
    // Predicated region
    $region50: #{value_network_forward.1} parent=1 // pred_check
      _
    $region51: #{value_network_forward.1} parent=1 // pred_check_branch
      %202 = sbr.rel (0) target = $region53
    $region52: #{value_network_forward.1} parent=1 // pred_region
      _
    $region53: #{value_network_forward.1} parent=1 // pred_fallthru
      _
    %203 = vsyncpa [#allocation4], 1
    %204 = vsyncpa [#allocation6], 1

</llo_original>
